<compile_context>
chip_gen: v5e
topology: v5e:2x2
jax: 0.10.0
libtpu: 0.0.40
codegen_flags: <defaults>
</compile_context>

<pallas_src>
import numpy as np
import jax
import jax.numpy as jnp
from jax.experimental import pallas as pl
from jax.experimental.pallas import tpu as pltpu


def _make_kernel(C, HWp):
    def ddpm_kernel(params_ref,   # (TB, 2+C) f32 VMEM: [sqrt_ab[t], sqrt_1mab[t], bias+temb[t]]
                    x0_ref,       # (TB, C*HWp) native-dtype VMEM
                    noise_ref,    # (TB, C*HWp) native-dtype VMEM
                    w_ref,        # (C, C)      f32 SMEM (1x1-conv weight scalars)
                    out_ref):     # (TB, C*HWp) output-dtype VMEM
        sa = params_ref[:, 0:1]                      # (TB, 1)  sqrt(alphas_bar)[t_b]
        s1 = params_ref[:, 1:2]                      # (TB, 1)  sqrt(1 - alphas_bar)[t_b]

        # Loop interchange: outer over input channel c.  x_t_c is computed
        # exactly once per input channel and immediately folded into the C
        # per-output-channel accumulators; no (TB, C*HWp) x_t temporary.
        acc = [None] * C
        for c in range(C):
            x0_c = x0_ref[:, c * HWp:(c + 1) * HWp].astype(jnp.float32)
            nz_c = noise_ref[:, c * HWp:(c + 1) * HWp].astype(jnp.float32)
            xt_c = sa * x0_c + s1 * nz_c             # Algorithm 1 q_sample (VPU)
            for o in range(C):
                term = w_ref[o, c] * xt_c            # scalar * vector FMA on VPU
                acc[o] = term if acc[o] is None else acc[o] + term

        # eps_pred = channel mix + bias + temb ; loss = (eps_pred - noise)^2
        for o in range(C):
            nz_o = noise_ref[:, o * HWp:(o + 1) * HWp].astype(jnp.float32)
            d = acc[o] + params_ref[:, 2 + o:3 + o] - nz_o
            out_ref[:, o * HWp:(o + 1) * HWp] = (d * d).astype(out_ref.dtype)

    return ddpm_kernel


def _pick_tb(B, row_elems, in_bytes, out_bytes, budget_bytes=12 << 20):
    """Batch-tile size.

    Footprint model per batch row in the pipeline: double-buffered x0 + noise
    (2 * 2 * in_bytes), double-buffered output (2 * out_bytes) and ~8 B/elem
    of f32 accumulators / transients.  Budget chosen to fit v5e's 16 MiB
    scoped-VMEM default with headroom.  TB no longer has to divide B (ragged
    last block handled by cdiv grid); for B >= 16 TB is capped at ~B/2 so the
    grid has >= 2 steps and both v7x TensorCores get work.
    """
    per_row = row_elems * (4 * in_bytes + 2 * out_bytes + 8) + 64
    tb = max(8, (min(B, max(1, budget_bytes // per_row)) // 8) * 8)
    if B >= 16:
        tb = min(tb, max(8, ((B // 2) // 8) * 8))
    if tb >= B:
        return B                      # single full-batch tile (always a legal block)
    return tb


def ddpm_train_objective(x_0, noise, t, sqrt_ab, sqrt_1mab, w, bias, temb):
    """Per-element squared error, shape (B, C, H, W), in x_0's dtype.

    Note: assumes contiguous NCHW input (channel stride = H*W after flatten).
    """
    B, C, H, W = x_0.shape
    HW = H * W
    HWp = max(128, ((HW + 127) // 128) * 128)        # lane-aligned per-channel stride
    in_dt = x_0.dtype
    out_dt = x_0.dtype

    # No dtype upcast here: stream native dtype, cast in-kernel under the DMA.
    if HWp != HW:
        pad = HWp - HW
        x0_r = jnp.pad(x_0.reshape(B, C, HW), ((0, 0), (0, 0), (0, pad))).reshape(B, C * HWp)
        nz_r = jnp.pad(noise.reshape(B, C, HW), ((0, 0), (0, 0), (0, pad))).reshape(B, C * HWp)
    else:
        x0_r = x_0.reshape(B, C * HWp)
        nz_r = noise.reshape(B, C * HWp)

    # Hoist every per-batch gather into one small packed f32 operand.
    sa = sqrt_ab[t].astype(jnp.float32)[:, None]              # (B, 1)
    s1 = sqrt_1mab[t].astype(jnp.float32)[:, None]            # (B, 1)
    bt = (bias[None, :] + temb[t]).astype(jnp.float32)        # (B, C)
    params = jnp.concatenate([sa, s1, bt], axis=1)            # (B, 2+C)

    row_elems = C * HWp
    in_b = jnp.dtype(in_dt).itemsize
    out_b = jnp.dtype(out_dt).itemsize
    TB = _pick_tb(B, row_elems, in_b, out_b)
    nb = pl.cdiv(B, TB)

    kernel = _make_kernel(C, HWp)
    cost = pl.CostEstimate(
        flops=int(B * row_elems * (3 + 2 * C + 3)),
        transcendentals=0,
        bytes_accessed=int(B * row_elems * (2 * in_b + out_b)
                           + B * (2 + C) * 4 + C * C * 4),
    )

    out = pl.pallas_call(
        kernel,
        out_shape=jax.ShapeDtypeStruct((B, row_elems), out_dt),
        grid=(nb,),
        in_specs=[
            pl.BlockSpec((TB, 2 + C), lambda i: (i, 0)),        # packed per-batch params
            pl.BlockSpec((TB, row_elems), lambda i: (i, 0)),    # x_0 (native dtype)
            pl.BlockSpec((TB, row_elems), lambda i: (i, 0)),    # noise (native dtype)
            pl.BlockSpec(memory_space=pltpu.MemorySpace.SMEM),  # W (C,C) scalars
        ],
        out_specs=pl.BlockSpec((TB, row_elems), lambda i: (i, 0)),
        compiler_params=pltpu.CompilerParams(
            dimension_semantics=("parallel",),
            vmem_limit_bytes=32 << 20),
        cost_estimate=cost,
    )(params, x0_r, nz_r, w.astype(jnp.float32))

    out = out.reshape(B, C, HWp)
    if HWp != HW:
        out = out[:, :, :HW]
    return out.reshape(B, C, H, W)


def _reference(x_0, noise, t, sqrt_ab, sqrt_1mab, w, bias, temb):
    B, C, H, W = x_0.shape
    x0f = x_0.astype(jnp.float32)
    nzf = noise.astype(jnp.float32)
    sa = sqrt_ab[t].reshape(B, 1, 1, 1).astype(jnp.float32)
    s1 = sqrt_1mab[t].reshape(B, 1, 1, 1).astype(jnp.float32)
    x_t = sa * x0f + s1 * nzf
    xt_f = x_t.reshape(B, C, H * W)
    eps = jnp.einsum("oc,bcs->bos", w.astype(jnp.float32), xt_f,
                     precision=jax.lax.Precision.HIGHEST)
    eps = eps + bias.reshape(1, C, 1) + temb[t].reshape(B, C, 1)
    diff = eps.reshape(B, C, H, W) - nzf
    return diff * diff


if __name__ == "__main__":
    # small shapes consistent with the module's forward
    B, C, H, W = 2, 4, 16, 16
    total_diffusion_steps = 8
    beta_1, beta_t = 1e-4, 2e-2

    # diffusion schedule (float64 like the PyTorch buffers, then cast)
    betas = np.linspace(beta_1, beta_t, total_diffusion_steps, dtype=np.float64)
    alphas = 1.0 - betas
    alphas_bar = np.cumprod(alphas)
    sqrt_ab = jnp.asarray(np.sqrt(alphas_bar), dtype=jnp.float32)
    sqrt_1mab = jnp.asarray(np.sqrt(1.0 - alphas_bar), dtype=jnp.float32)

    # deterministic inputs / parameters (RNG for t and noise stays in JAX glue,
    # matching torch.randint / torch.randn_like in the original forward)
    key = jax.random.PRNGKey(0)
    k_x, k_t, k_n, k_w, k_b, k_e = jax.random.split(key, 6)
    x_0 = jax.random.normal(k_x, (B, C, H, W), dtype=jnp.float32)
    t = jax.random.randint(k_t, (B,), 0, total_diffusion_steps, dtype=jnp.int32)
    noise = jax.random.normal(k_n, (B, C, H, W), dtype=jnp.float32)

    w_model = jax.random.normal(k_w, (C, C), dtype=jnp.float32) * 0.3
    bias_model = jax.random.normal(k_b, (C,), dtype=jnp.float32) * 0.1
    temb_model = jax.random.normal(k_e, (total_diffusion_steps, C),
                                   dtype=jnp.float32) * 0.1

    loss = ddpm_train_objective(x_0, noise, t, sqrt_ab, sqrt_1mab,
                                w_model, bias_model, temb_model)
    loss = jax.block_until_ready(loss)

    ref = _reference(x_0, noise, t, sqrt_ab, sqrt_1mab,
                     w_model, bias_model, temb_model)
    np.testing.assert_allclose(np.asarray(loss), np.asarray(ref),
                               rtol=1e-4, atol=1e-4)

    print("KERNEL_OK")
</pallas_src>

<mosaic_0001>
module attributes {stable_mosaic.version = 11 : i64} {
  func.func @ddpm_kernel(%arg0: i32, %arg1: memref<2x6xf32, #tpu.memory_space<vmem>>, %arg2: memref<2x1024xf32, #tpu.memory_space<vmem>>, %arg3: memref<2x1024xf32, #tpu.memory_space<vmem>>, %arg4: memref<4x4xf32, #tpu.memory_space<smem>>, %arg5: memref<2x1024xf32, #tpu.memory_space<vmem>>) attributes {dimension_semantics = [#tpu.dimension_semantics<parallel>], iteration_bounds = array<i64: 1>, scalar_prefetch = 0 : i64, scratch_operands = 0 : i64, tpu.core_type = #tpu.core_type<tc>, window_params = [{transform_indices = @transform_0, window_bounds = array<i64: 2, 6>}, {transform_indices = @transform_1, window_bounds = array<i64: 2, 1024>}, {transform_indices = @transform_2, window_bounds = array<i64: 2, 1024>}, {transform_indices = @transform_3, window_bounds = array<i64: 4, 4>}, {transform_indices = @transform_4, window_bounds = array<i64: 2, 1024>}]} {
    %c0 = arith.constant 0 : index
    %c0_0 = arith.constant 0 : index
    %0 = vector.load %arg1[%c0, %c0_0] : memref<2x6xf32, #tpu.memory_space<vmem>>, vector<2x1xf32>
    %c0_1 = arith.constant 0 : index
    %c1 = arith.constant 1 : index
    %1 = vector.load %arg1[%c0_1, %c1] : memref<2x6xf32, #tpu.memory_space<vmem>>, vector<2x1xf32>
    %c0_2 = arith.constant 0 : index
    %c0_3 = arith.constant 0 : index
    %2 = vector.load %arg2[%c0_2, %c0_3] : memref<2x1024xf32, #tpu.memory_space<vmem>>, vector<2x256xf32>
    %c0_4 = arith.constant 0 : index
    %c0_5 = arith.constant 0 : index
    %3 = vector.load %arg3[%c0_4, %c0_5] : memref<2x1024xf32, #tpu.memory_space<vmem>>, vector<2x256xf32>
    %4 = vector.broadcast %0 : vector<2x1xf32> to vector<2x256xf32>
    %5 = arith.mulf %4, %2 : vector<2x256xf32>
    %6 = vector.broadcast %1 : vector<2x1xf32> to vector<2x256xf32>
    %7 = arith.mulf %6, %3 : vector<2x256xf32>
    %8 = arith.addf %5, %7 : vector<2x256xf32>
    %c0_6 = arith.constant 0 : index
    %c0_7 = arith.constant 0 : index
    %9 = memref.load %arg4[%c0_6, %c0_7] : memref<4x4xf32, #tpu.memory_space<smem>>
    %10 = vector.broadcast %9 : f32 to vector<2x256xf32>
    %11 = arith.mulf %10, %8 : vector<2x256xf32>
    %c1_8 = arith.constant 1 : index
    %c0_9 = arith.constant 0 : index
    %12 = memref.load %arg4[%c1_8, %c0_9] : memref<4x4xf32, #tpu.memory_space<smem>>
    %13 = vector.broadcast %12 : f32 to vector<2x256xf32>
    %14 = arith.mulf %13, %8 : vector<2x256xf32>
    %c2 = arith.constant 2 : index
    %c0_10 = arith.constant 0 : index
    %15 = memref.load %arg4[%c2, %c0_10] : memref<4x4xf32, #tpu.memory_space<smem>>
    %16 = vector.broadcast %15 : f32 to vector<2x256xf32>
    %17 = arith.mulf %16, %8 : vector<2x256xf32>
    %c3 = arith.constant 3 : index
    %c0_11 = arith.constant 0 : index
    %18 = memref.load %arg4[%c3, %c0_11] : memref<4x4xf32, #tpu.memory_space<smem>>
    %19 = vector.broadcast %18 : f32 to vector<2x256xf32>
    %20 = arith.mulf %19, %8 : vector<2x256xf32>
    %c0_12 = arith.constant 0 : index
    %c256 = arith.constant 256 : index
    %21 = vector.load %arg2[%c0_12, %c256] : memref<2x1024xf32, #tpu.memory_space<vmem>>, vector<2x256xf32>
    %c0_13 = arith.constant 0 : index
    %c256_14 = arith.constant 256 : index
    %22 = vector.load %arg3[%c0_13, %c256_14] : memref<2x1024xf32, #tpu.memory_space<vmem>>, vector<2x256xf32>
    %23 = vector.broadcast %0 : vector<2x1xf32> to vector<2x256xf32>
    %24 = arith.mulf %23, %21 : vector<2x256xf32>
    %25 = vector.broadcast %1 : vector<2x1xf32> to vector<2x256xf32>
    %26 = arith.mulf %25, %22 : vector<2x256xf32>
    %27 = arith.addf %24, %26 : vector<2x256xf32>
    %c0_15 = arith.constant 0 : index
    %c1_16 = arith.constant 1 : index
    %28 = memref.load %arg4[%c0_15, %c1_16] : memref<4x4xf32, #tpu.memory_space<smem>>
    %29 = vector.broadcast %28 : f32 to vector<2x256xf32>
    %30 = arith.mulf %29, %27 : vector<2x256xf32>
    %31 = arith.addf %11, %30 : vector<2x256xf32>
    %c1_17 = arith.constant 1 : index
    %c1_18 = arith.constant 1 : index
    %32 = memref.load %arg4[%c1_17, %c1_18] : memref<4x4xf32, #tpu.memory_space<smem>>
    %33 = vector.broadcast %32 : f32 to vector<2x256xf32>
    %34 = arith.mulf %33, %27 : vector<2x256xf32>
    %35 = arith.addf %14, %34 : vector<2x256xf32>
    %c2_19 = arith.constant 2 : index
    %c1_20 = arith.constant 1 : index
    %36 = memref.load %arg4[%c2_19, %c1_20] : memref<4x4xf32, #tpu.memory_space<smem>>
    %37 = vector.broadcast %36 : f32 to vector<2x256xf32>
    %38 = arith.mulf %37, %27 : vector<2x256xf32>
    %39 = arith.addf %17, %38 : vector<2x256xf32>
    %c3_21 = arith.constant 3 : index
    %c1_22 = arith.constant 1 : index
    %40 = memref.load %arg4[%c3_21, %c1_22] : memref<4x4xf32, #tpu.memory_space<smem>>
    %41 = vector.broadcast %40 : f32 to vector<2x256xf32>
    %42 = arith.mulf %41, %27 : vector<2x256xf32>
    %43 = arith.addf %20, %42 : vector<2x256xf32>
    %c0_23 = arith.constant 0 : index
    %c512 = arith.constant 512 : index
    %44 = vector.load %arg2[%c0_23, %c512] : memref<2x1024xf32, #tpu.memory_space<vmem>>, vector<2x256xf32>
    %c0_24 = arith.constant 0 : index
    %c512_25 = arith.constant 512 : index
    %45 = vector.load %arg3[%c0_24, %c512_25] : memref<2x1024xf32, #tpu.memory_space<vmem>>, vector<2x256xf32>
    %46 = vector.broadcast %0 : vector<2x1xf32> to vector<2x256xf32>
    %47 = arith.mulf %46, %44 : vector<2x256xf32>
    %48 = vector.broadcast %1 : vector<2x1xf32> to vector<2x256xf32>
    %49 = arith.mulf %48, %45 : vector<2x256xf32>
    %50 = arith.addf %47, %49 : vector<2x256xf32>
    %c0_26 = arith.constant 0 : index
    %c2_27 = arith.constant 2 : index
    %51 = memref.load %arg4[%c0_26, %c2_27] : memref<4x4xf32, #tpu.memory_space<smem>>
    %52 = vector.broadcast %51 : f32 to vector<2x256xf32>
    %53 = arith.mulf %52, %50 : vector<2x256xf32>
    %54 = arith.addf %31, %53 : vector<2x256xf32>
    %c1_28 = arith.constant 1 : index
    %c2_29 = arith.constant 2 : index
    %55 = memref.load %arg4[%c1_28, %c2_29] : memref<4x4xf32, #tpu.memory_space<smem>>
    %56 = vector.broadcast %55 : f32 to vector<2x256xf32>
    %57 = arith.mulf %56, %50 : vector<2x256xf32>
    %58 = arith.addf %35, %57 : vector<2x256xf32>
    %c2_30 = arith.constant 2 : index
    %c2_31 = arith.constant 2 : index
    %59 = memref.load %arg4[%c2_30, %c2_31] : memref<4x4xf32, #tpu.memory_space<smem>>
    %60 = vector.broadcast %59 : f32 to vector<2x256xf32>
    %61 = arith.mulf %60, %50 : vector<2x256xf32>
    %62 = arith.addf %39, %61 : vector<2x256xf32>
    %c3_32 = arith.constant 3 : index
    %c2_33 = arith.constant 2 : index
    %63 = memref.load %arg4[%c3_32, %c2_33] : memref<4x4xf32, #tpu.memory_space<smem>>
    %64 = vector.broadcast %63 : f32 to vector<2x256xf32>
    %65 = arith.mulf %64, %50 : vector<2x256xf32>
    %66 = arith.addf %43, %65 : vector<2x256xf32>
    %c0_34 = arith.constant 0 : index
    %c768 = arith.constant 768 : index
    %67 = vector.load %arg2[%c0_34, %c768] : memref<2x1024xf32, #tpu.memory_space<vmem>>, vector<2x256xf32>
    %c0_35 = arith.constant 0 : index
    %c768_36 = arith.constant 768 : index
    %68 = vector.load %arg3[%c0_35, %c768_36] : memref<2x1024xf32, #tpu.memory_space<vmem>>, vector<2x256xf32>
    %69 = vector.broadcast %0 : vector<2x1xf32> to vector<2x256xf32>
    %70 = arith.mulf %69, %67 : vector<2x256xf32>
    %71 = vector.broadcast %1 : vector<2x1xf32> to vector<2x256xf32>
    %72 = arith.mulf %71, %68 : vector<2x256xf32>
    %73 = arith.addf %70, %72 : vector<2x256xf32>
    %c0_37 = arith.constant 0 : index
    %c3_38 = arith.constant 3 : index
    %74 = memref.load %arg4[%c0_37, %c3_38] : memref<4x4xf32, #tpu.memory_space<smem>>
    %75 = vector.broadcast %74 : f32 to vector<2x256xf32>
    %76 = arith.mulf %75, %73 : vector<2x256xf32>
    %77 = arith.addf %54, %76 : vector<2x256xf32>
    %c1_39 = arith.constant 1 : index
    %c3_40 = arith.constant 3 : index
    %78 = memref.load %arg4[%c1_39, %c3_40] : memref<4x4xf32, #tpu.memory_space<smem>>
    %79 = vector.broadcast %78 : f32 to vector<2x256xf32>
    %80 = arith.mulf %79, %73 : vector<2x256xf32>
    %81 = arith.addf %58, %80 : vector<2x256xf32>
    %c2_41 = arith.constant 2 : index
    %c3_42 = arith.constant 3 : index
    %82 = memref.load %arg4[%c2_41, %c3_42] : memref<4x4xf32, #tpu.memory_space<smem>>
    %83 = vector.broadcast %82 : f32 to vector<2x256xf32>
    %84 = arith.mulf %83, %73 : vector<2x256xf32>
    %85 = arith.addf %62, %84 : vector<2x256xf32>
    %c3_43 = arith.constant 3 : index
    %c3_44 = arith.constant 3 : index
    %86 = memref.load %arg4[%c3_43, %c3_44] : memref<4x4xf32, #tpu.memory_space<smem>>
    %87 = vector.broadcast %86 : f32 to vector<2x256xf32>
    %88 = arith.mulf %87, %73 : vector<2x256xf32>
    %89 = arith.addf %66, %88 : vector<2x256xf32>
    %c0_45 = arith.constant 0 : index
    %c0_46 = arith.constant 0 : index
    %90 = vector.load %arg3[%c0_45, %c0_46] : memref<2x1024xf32, #tpu.memory_space<vmem>>, vector<2x256xf32>
    %c0_47 = arith.constant 0 : index
    %c2_48 = arith.constant 2 : index
    %91 = vector.load %arg1[%c0_47, %c2_48] : memref<2x6xf32, #tpu.memory_space<vmem>>, vector<2x1xf32>
    %92 = vector.broadcast %91 : vector<2x1xf32> to vector<2x256xf32>
    %93 = arith.addf %77, %92 : vector<2x256xf32>
    %94 = arith.subf %93, %90 : vector<2x256xf32>
    %95 = arith.mulf %94, %94 : vector<2x256xf32>
    %c0_49 = arith.constant 0 : index
    %c0_50 = arith.constant 0 : index
    %96 = vector.load %arg5[%c0_49, %c0_50] : memref<2x1024xf32, #tpu.memory_space<vmem>>, vector<2x256xf32>
    tpu.vector_store %arg5[%c0_49, %c0_50], %95 {strides = array<i32>} : memref<2x1024xf32, #tpu.memory_space<vmem>>, vector<2x256xf32>,
    %c0_51 = arith.constant 0 : index
    %c256_52 = arith.constant 256 : index
    %97 = vector.load %arg3[%c0_51, %c256_52] : memref<2x1024xf32, #tpu.memory_space<vmem>>, vector<2x256xf32>
    %c0_53 = arith.constant 0 : index
    %c3_54 = arith.constant 3 : index
    %98 = vector.load %arg1[%c0_53, %c3_54] : memref<2x6xf32, #tpu.memory_space<vmem>>, vector<2x1xf32>
    %99 = vector.broadcast %98 : vector<2x1xf32> to vector<2x256xf32>
    %100 = arith.addf %81, %99 : vector<2x256xf32>
    %101 = arith.subf %100, %97 : vector<2x256xf32>
    %102 = arith.mulf %101, %101 : vector<2x256xf32>
    %c0_55 = arith.constant 0 : index
    %c256_56 = arith.constant 256 : index
    %103 = vector.load %arg5[%c0_55, %c256_56] : memref<2x1024xf32, #tpu.memory_space<vmem>>, vector<2x256xf32>
    tpu.vector_store %arg5[%c0_55, %c256_56], %102 {strides = array<i32>} : memref<2x1024xf32, #tpu.memory_space<vmem>>, vector<2x256xf32>,
    %c0_57 = arith.constant 0 : index
    %c512_58 = arith.constant 512 : index
    %104 = vector.load %arg3[%c0_57, %c512_58] : memref<2x1024xf32, #tpu.memory_space<vmem>>, vector<2x256xf32>
    %c0_59 = arith.constant 0 : index
    %c4 = arith.constant 4 : index
    %105 = vector.load %arg1[%c0_59, %c4] : memref<2x6xf32, #tpu.memory_space<vmem>>, vector<2x1xf32>
    %106 = vector.broadcast %105 : vector<2x1xf32> to vector<2x256xf32>
    %107 = arith.addf %85, %106 : vector<2x256xf32>
    %108 = arith.subf %107, %104 : vector<2x256xf32>
    %109 = arith.mulf %108, %108 : vector<2x256xf32>
    %c0_60 = arith.constant 0 : index
    %c512_61 = arith.constant 512 : index
    %110 = vector.load %arg5[%c0_60, %c512_61] : memref<2x1024xf32, #tpu.memory_space<vmem>>, vector<2x256xf32>
    tpu.vector_store %arg5[%c0_60, %c512_61], %109 {strides = array<i32>} : memref<2x1024xf32, #tpu.memory_space<vmem>>, vector<2x256xf32>,
    %c0_62 = arith.constant 0 : index
    %c768_63 = arith.constant 768 : index
    %111 = vector.load %arg3[%c0_62, %c768_63] : memref<2x1024xf32, #tpu.memory_space<vmem>>, vector<2x256xf32>
    %c0_64 = arith.constant 0 : index
    %c5 = arith.constant 5 : index
    %112 = vector.load %arg1[%c0_64, %c5] : memref<2x6xf32, #tpu.memory_space<vmem>>, vector<2x1xf32>
    %113 = vector.broadcast %112 : vector<2x1xf32> to vector<2x256xf32>
    %114 = arith.addf %89, %113 : vector<2x256xf32>
    %115 = arith.subf %114, %111 : vector<2x256xf32>
    %116 = arith.mulf %115, %115 : vector<2x256xf32>
    %c0_65 = arith.constant 0 : index
    %c768_66 = arith.constant 768 : index
    %117 = vector.load %arg5[%c0_65, %c768_66] : memref<2x1024xf32, #tpu.memory_space<vmem>>, vector<2x256xf32>
    tpu.vector_store %arg5[%c0_65, %c768_66], %116 {strides = array<i32>} : memref<2x1024xf32, #tpu.memory_space<vmem>>, vector<2x256xf32>,
    return
  }
  func.func @transform_0(%arg0: i32) -> (i32, i32) {
    %c0_i32 = arith.constant 0 : i32
    %c0_i32_0 = arith.constant 0 : i32
    return %arg0, %c0_i32 : i32, i32
  }
  func.func @transform_1(%arg0: i32) -> (i32, i32) {
    %c0_i32 = arith.constant 0 : i32
    %c0_i32_0 = arith.constant 0 : i32
    return %arg0, %c0_i32 : i32, i32
  }
  func.func @transform_2(%arg0: i32) -> (i32, i32) {
    %c0_i32 = arith.constant 0 : i32
    %c0_i32_0 = arith.constant 0 : i32
    return %arg0, %c0_i32 : i32, i32
  }
  func.func @transform_3(%arg0: i32) -> (i32, i32) {
    %c0_i32 = arith.constant 0 : i32
    %c0_i32_0 = arith.constant 0 : i32
    %c0_i32_1 = arith.constant 0 : i32
    return %c0_i32, %c0_i32_0 : i32, i32
  }
  func.func @transform_4(%arg0: i32) -> (i32, i32) {
    %c0_i32 = arith.constant 0 : i32
    %c0_i32_0 = arith.constant 0 : i32
    return %arg0, %c0_i32 : i32, i32
  }
}

</mosaic_0001>

<llo_original>
// kernel: tpu_custom_call.1
$region0: #{tpu_custom_call.1}
  #allocation0 [shape = 'u32[]', space=smem, size = 0x4, offset = 0x4, fixed_abs, tag = 'smem constant byte address 0x4 - core index']
  #allocation1 [shape = 'u32[72,128]{1,0:T(1,128)}', space=vmem, size = 0x9000, scoped, tag = 'internal scratch']
  %s0 = inlined_call_operand.hbm [shape: f32[2,6], index: 0, kind: input, shape index: {}]
  %s1 = inlined_call_operand.hbm [shape: f32[2,1024], index: 1, kind: input, shape index: {}]
  %s2 = inlined_call_operand.hbm [shape: f32[2,1024], index: 2, kind: input, shape index: {}]
  %s3 = inlined_call_operand.hbm [shape: f32[4,4], index: 3, kind: input, shape index: {}]
  %s4 = inlined_call_operand.hbm [shape: f32[2,1024], index: 4, kind: output, shape index: {}]
  %s5 = sld [smem:[#allocation0]]
  $region42: #{tpu_custom_call.1} parent=0
    _
  %s7 = ssub.s32 1, %s5
  %s8 = scalar_select 0, %s7, %s5
  $region1: #{tpu_custom_call.1} parent=0
    #allocation2 [shape = 'u8[1024]{0}', space=vmem, size = 0x400, scoped, tag = 'input window, operand 0, single buffered']
    #allocation3 [shape = 's32[1]{0}', space=sflag, size = 0x4, scoped, tag = 'scoped memory for tpu_custom_call.1']
    #allocation4 [shape = 's32[1]{0}', space=sflag, size = 0x4, scoped, tag = 'scoped memory for tpu_custom_call.1']
    #allocation5 [shape = 's32[1]{0}', space=sflag, size = 0x4, scoped, tag = 'scoped memory for tpu_custom_call.1']
    #allocation6 [shape = 'u8[8192]{0}', space=vmem, size = 0x2000, scoped, tag = 'input window, operand 1, single buffered']
    #allocation7 [shape = 's32[1]{0}', space=sflag, size = 0x4, scoped, tag = 'scoped memory for tpu_custom_call.1']
    #allocation8 [shape = 'u8[8192]{0}', space=vmem, size = 0x2000, scoped, tag = 'input window, operand 2, single buffered']
    #allocation9 [shape = 'u8[2048]{0}', space=smem, size = 0x800, scoped, tag = 'input window, operand 3, single buffered']
    #allocation10 [shape = 'u8[8192]{0}', space=vmem, size = 0x2000, scoped, tag = 'output window, operand 0, single buffered']
    %9 = vsyncpa [#allocation3], 0
    %10 = vsyncpa [#allocation7], 0
    %11 = vsyncpa [#allocation5], 0
    %12 = vsyncpa [#allocation4], 0
    // Predicated region
    $region2: #{tpu_custom_call.1} parent=1 // pred_check
      _
    $region3: #{tpu_custom_call.1} parent=1 // pred_check_branch
      %14 = sbr.rel (0) target = $region5
    $region4: #{tpu_custom_call.1} parent=1 // pred_region
      %16 = vsyncadd [#allocation3], 0
      %s18 = sshll.u32 %s0, 4
      %s19 = int_to_ptr.hbm [resolvable:$true] %s18
      %s20 = sshll.u32 [#allocation2], 4
      %s21 = int_to_ptr.vmem [resolvable:$true] %s20
      %23 = dma.hbm_to_vmem [thread:$0]  %s19, 32, %s21, [#allocation3]
    $region5: #{tpu_custom_call.1} parent=1 // pred_fallthru
      _
    // Predicated region
    $region6: #{tpu_custom_call.1} parent=1 // pred_check
      _
    $region7: #{tpu_custom_call.1} parent=1 // pred_check_branch
      %25 = sbr.rel (0) target = $region9
    $region8: #{tpu_custom_call.1} parent=1 // pred_region
      %27 = vsyncadd [#allocation7], 0
      %s29 = sshll.u32 %s1, 4
      %s30 = int_to_ptr.hbm [resolvable:$true] %s29
      %s31 = sshll.u32 [#allocation6], 4
      %s32 = int_to_ptr.vmem [resolvable:$true] %s31
      %34 = dma.hbm_to_vmem [thread:$0]  %s30, 256, %s32, [#allocation7]
    $region9: #{tpu_custom_call.1} parent=1 // pred_fallthru
      _
    // Predicated region
    $region10: #{tpu_custom_call.1} parent=1 // pred_check
      _
    $region11: #{tpu_custom_call.1} parent=1 // pred_check_branch
      %36 = sbr.rel (0) target = $region13
    $region12: #{tpu_custom_call.1} parent=1 // pred_region
      %38 = vsyncadd [#allocation7], 0
      %s40 = sshll.u32 %s2, 4
      %s41 = int_to_ptr.hbm [resolvable:$true] %s40
      %s42 = sshll.u32 [#allocation8], 4
      %s43 = int_to_ptr.vmem [resolvable:$true] %s42
      %45 = dma.hbm_to_vmem [thread:$0]  %s41, 256, %s43, [#allocation7]
    $region13: #{tpu_custom_call.1} parent=1 // pred_fallthru
      _
    // Predicated region
    $region14: #{tpu_custom_call.1} parent=1 // pred_check
      _
    $region15: #{tpu_custom_call.1} parent=1 // pred_check_branch
      %47 = sbr.rel (0) target = $region17
    $region16: #{tpu_custom_call.1} parent=1 // pred_region
      %49 = vsyncadd [#allocation5], 0
      %s51 = sshll.u32 %s3, 4
      %s52 = int_to_ptr.hbm [resolvable:$true] %s51
      %54 = dma.hbm_to_smem %s52, 64, [#allocation9], [#allocation5]
    $region17: #{tpu_custom_call.1} parent=1 // pred_fallthru
      _
    // Predicated region
    $region18: #{tpu_custom_call.1} parent=1 // pred_check
      _
    $region19: #{tpu_custom_call.1} parent=1 // pred_check_branch
      %56 = sbr.rel (0) target = $region21
    $region20: #{tpu_custom_call.1} parent=1 // pred_region
      %58 = dma.done [#allocation3], 32
    $region21: #{tpu_custom_call.1} parent=1 // pred_fallthru
      _
    // Predicated region
    $region22: #{tpu_custom_call.1} parent=1 // pred_check
      _
    $region23: #{tpu_custom_call.1} parent=1 // pred_check_branch
      %60 = sbr.rel (0) target = $region25
    $region24: #{tpu_custom_call.1} parent=1 // pred_region
      %62 = dma.done [#allocation7], 256
    $region25: #{tpu_custom_call.1} parent=1 // pred_fallthru
      _
    // Predicated region
    $region26: #{tpu_custom_call.1} parent=1 // pred_check
      _
    $region27: #{tpu_custom_call.1} parent=1 // pred_check_branch
      %64 = sbr.rel (0) target = $region29
    $region28: #{tpu_custom_call.1} parent=1 // pred_region
      %66 = dma.done [#allocation7], 256
    $region29: #{tpu_custom_call.1} parent=1 // pred_fallthru
      _
    // Predicated region
    $region30: #{tpu_custom_call.1} parent=1 // pred_check
      _
    $region31: #{tpu_custom_call.1} parent=1 // pred_check_branch
      %68 = sbr.rel (0) target = $region33
    $region32: #{tpu_custom_call.1} parent=1 // pred_region
      %70 = dma.done [#allocation5], 64
    $region33: #{tpu_custom_call.1} parent=1 // pred_fallthru
      _
    %71 = sfence
    %v72 = vld [vmem:[#allocation2] sm:$0x3]
    %v73 = vld [vmem:[#allocation6] sm:$0xf]
    %v74 = vld [vmem:[#allocation8] sm:$0xf]
    %76 = vset.pattern.permute.xlu0 0
    %77 = vperm.xlu0 %76, %v72
    %v78 = vpop.permute.xlu0 %77
    %81 = vst [vmem:[#allocation1] ss:$4 sm:$0xff] %v73
    %v82 = vld.sshfl [vmem:[#allocation1] sm:$0xff pattern:$0x73625140]
    %v83 = vld.sshfl [vmem:[#allocation1 + $0x8] sm:$0xff pattern:$0x73625140]
    %v86 = vmul.f32 %v78, %v82
    %v87 = vmul.f32 %v78, %v83
    %88 = vset.pattern.permute.xlu0 1
    %89 = vperm.xlu0 %88, %v72
    %v90 = vpop.permute.xlu0 %89
    %93 = vst [vmem:[#allocation1] ss:$4 sm:$0xff] %v74
    %v94 = vld.sshfl [vmem:[#allocation1] sm:$0xff pattern:$0x73625140]
    %v95 = vld.sshfl [vmem:[#allocation1 + $0x8] sm:$0xff pattern:$0x73625140]
    %v98 = vmul.f32 %v90, %v94
    %v99 = vmul.f32 %v90, %v95
    %v100 = vadd.f32 %v86, %v98
    %v101 = vadd.f32 %v87, %v99
    %s102 = sld [smem:[#allocation9]]
    %v103 = vstv %s102
    %v104 = vmul.f32 %v103, %v100
    %v105 = vmul.f32 %v103, %v101
    %s106 = sld [smem:[#allocation9 + $0x80]]
    %v107 = vstv %s106
    %v108 = vmul.f32 %v107, %v100
    %v109 = vmul.f32 %v107, %v101
    %s110 = sld [smem:[#allocation9 + $0x100]]
    %v111 = vstv %s110
    %v112 = vmul.f32 %v111, %v100
    %v113 = vmul.f32 %v111, %v101
    %s114 = sld [smem:[#allocation9 + $0x180]]
    %v115 = vstv %s114
    %v116 = vmul.f32 %v115, %v100
    %v117 = vmul.f32 %v115, %v101
    %v118 = vld [vmem:[#allocation6 + $0x4] sm:$0xf]
    %v119 = vld [vmem:[#allocation8 + $0x4] sm:$0xf]
    %121 = vst [vmem:[#allocation1] ss:$4 sm:$0xff] %v118
    %v122 = vld.sshfl [vmem:[#allocation1] sm:$0xff pattern:$0x73625140]
    %v123 = vld.sshfl [vmem:[#allocation1 + $0x8] sm:$0xff pattern:$0x73625140]
    %v126 = vmul.f32 %v78, %v122
    %v127 = vmul.f32 %v78, %v123
    %129 = vst [vmem:[#allocation1] ss:$4 sm:$0xff] %v119
    %v130 = vld.sshfl [vmem:[#allocation1] sm:$0xff pattern:$0x73625140]
    %v131 = vld.sshfl [vmem:[#allocation1 + $0x8] sm:$0xff pattern:$0x73625140]
    %v134 = vmul.f32 %v90, %v130
    %v135 = vmul.f32 %v90, %v131
    %v136 = vadd.f32 %v126, %v134
    %v137 = vadd.f32 %v127, %v135
    %s138 = sld [smem:[#allocation9 + $0x1]]
    %v139 = vstv %s138
    %v140 = vmul.f32 %v139, %v136
    %v141 = vmul.f32 %v139, %v137
    %v142 = vadd.f32 %v104, %v140
    %v143 = vadd.f32 %v105, %v141
    %s144 = sld [smem:[#allocation9 + $0x81]]
    %v145 = vstv %s144
    %v146 = vmul.f32 %v145, %v136
    %v147 = vmul.f32 %v145, %v137
    %v148 = vadd.f32 %v108, %v146
    %v149 = vadd.f32 %v109, %v147
    %s150 = sld [smem:[#allocation9 + $0x101]]
    %v151 = vstv %s150
    %v152 = vmul.f32 %v151, %v136
    %v153 = vmul.f32 %v151, %v137
    %v154 = vadd.f32 %v112, %v152
    %v155 = vadd.f32 %v113, %v153
    %s156 = sld [smem:[#allocation9 + $0x181]]
    %v157 = vstv %s156
    %v158 = vmul.f32 %v157, %v136
    %v159 = vmul.f32 %v157, %v137
    %v160 = vadd.f32 %v116, %v158
    %v161 = vadd.f32 %v117, %v159
    %v162 = vld [vmem:[#allocation6 + $0x8] sm:$0xf]
    %v163 = vld [vmem:[#allocation8 + $0x8] sm:$0xf]
    %165 = vst [vmem:[#allocation1] ss:$4 sm:$0xff] %v162
    %v166 = vld.sshfl [vmem:[#allocation1] sm:$0xff pattern:$0x73625140]
    %v167 = vld.sshfl [vmem:[#allocation1 + $0x8] sm:$0xff pattern:$0x73625140]
    %v170 = vmul.f32 %v78, %v166
    %v171 = vmul.f32 %v78, %v167
    %173 = vst [vmem:[#allocation1] ss:$4 sm:$0xff] %v163
    %v174 = vld.sshfl [vmem:[#allocation1] sm:$0xff pattern:$0x73625140]
    %v175 = vld.sshfl [vmem:[#allocation1 + $0x8] sm:$0xff pattern:$0x73625140]
    %v178 = vmul.f32 %v90, %v174
    %v179 = vmul.f32 %v90, %v175
    %v180 = vadd.f32 %v170, %v178
    %v181 = vadd.f32 %v171, %v179
    %s182 = sld [smem:[#allocation9 + $0x2]]
    %v183 = vstv %s182
    %v184 = vmul.f32 %v183, %v180
    %v185 = vmul.f32 %v183, %v181
    %v186 = vadd.f32 %v142, %v184
    %v187 = vadd.f32 %v143, %v185
    %s188 = sld [smem:[#allocation9 + $0x82]]
    %v189 = vstv %s188
    %v190 = vmul.f32 %v189, %v180
    %v191 = vmul.f32 %v189, %v181
    %v192 = vadd.f32 %v148, %v190
    %v193 = vadd.f32 %v149, %v191
    %s194 = sld [smem:[#allocation9 + $0x102]]
    %v195 = vstv %s194
    %v196 = vmul.f32 %v195, %v180
    %v197 = vmul.f32 %v195, %v181
    %v198 = vadd.f32 %v154, %v196
    %v199 = vadd.f32 %v155, %v197
    %s200 = sld [smem:[#allocation9 + $0x182]]
    %v201 = vstv %s200
    %v202 = vmul.f32 %v201, %v180
    %v203 = vmul.f32 %v201, %v181
    %v204 = vadd.f32 %v160, %v202
    %v205 = vadd.f32 %v161, %v203
    %v206 = vld [vmem:[#allocation6 + $0xc] sm:$0xf]
    %v207 = vld [vmem:[#allocation8 + $0xc] sm:$0xf]
    %209 = vst [vmem:[#allocation1] ss:$4 sm:$0xff] %v206
    %v210 = vld.sshfl [vmem:[#allocation1] sm:$0xff pattern:$0x73625140]
    %v211 = vld.sshfl [vmem:[#allocation1 + $0x8] sm:$0xff pattern:$0x73625140]
    %v214 = vmul.f32 %v78, %v210
    %v215 = vmul.f32 %v78, %v211
    %217 = vst [vmem:[#allocation1] ss:$4 sm:$0xff] %v207
    %v218 = vld.sshfl [vmem:[#allocation1] sm:$0xff pattern:$0x73625140]
    %v219 = vld.sshfl [vmem:[#allocation1 + $0x8] sm:$0xff pattern:$0x73625140]
    %v222 = vmul.f32 %v90, %v218
    %v223 = vmul.f32 %v90, %v219
    %v224 = vadd.f32 %v214, %v222
    %v225 = vadd.f32 %v215, %v223
    %s226 = sld [smem:[#allocation9 + $0x3]]
    %v227 = vstv %s226
    %v228 = vmul.f32 %v227, %v224
    %v229 = vmul.f32 %v227, %v225
    %v230 = vadd.f32 %v186, %v228
    %v231 = vadd.f32 %v187, %v229
    %s232 = sld [smem:[#allocation9 + $0x83]]
    %v233 = vstv %s232
    %v234 = vmul.f32 %v233, %v224
    %v235 = vmul.f32 %v233, %v225
    %v236 = vadd.f32 %v192, %v234
    %v237 = vadd.f32 %v193, %v235
    %s238 = sld [smem:[#allocation9 + $0x103]]
    %v239 = vstv %s238
    %v240 = vmul.f32 %v239, %v224
    %v241 = vmul.f32 %v239, %v225
    %v242 = vadd.f32 %v198, %v240
    %v243 = vadd.f32 %v199, %v241
    %s244 = sld [smem:[#allocation9 + $0x183]]
    %v245 = vstv %s244
    %v246 = vmul.f32 %v245, %v224
    %v247 = vmul.f32 %v245, %v225
    %v248 = vadd.f32 %v204, %v246
    %v249 = vadd.f32 %v205, %v247
    %v250 = vld [vmem:[#allocation2] sm:$0x3]
    %252 = vset.pattern.permute.xlu0 2
    %253 = vperm.xlu0 %252, %v250
    %v254 = vpop.permute.xlu0 %253
    %v256 = vadd.f32 %v230, %v254
    %v257 = vadd.f32 %v231, %v254
    %258 = vst [vmem:[#allocation1] ss:$4 sm:$0xff] %v74
    %v259 = vld.sshfl [vmem:[#allocation1] sm:$0xff pattern:$0x73625140]
    %v260 = vld.sshfl [vmem:[#allocation1 + $0x8] sm:$0xff pattern:$0x73625140]
    %v263 = vsub.f32 %v256, %v259
    %v264 = vsub.f32 %v257, %v260
    %v265 = vmul.f32 %v263, %v263
    %v266 = vmul.f32 %v264, %v264
    %v269 = vrot.slane %v266, 6
    %vm270 = vcmask 1041408
    %v271 = vsel %vm270, %v265, %v269
    %273 = vst [vmem:[#allocation10] sm:$0xf] %v271
    %v274 = vld [vmem:[#allocation8 + $0x4] sm:$0xf]
    %v275 = vld [vmem:[#allocation2] sm:$0x3]
    %277 = vset.pattern.permute.xlu0 3
    %278 = vperm.xlu0 %277, %v275
    %v279 = vpop.permute.xlu0 %278
    %v281 = vadd.f32 %v236, %v279
    %v282 = vadd.f32 %v237, %v279
    %284 = vst [vmem:[#allocation1] ss:$4 sm:$0xff] %v274
    %v285 = vld.sshfl [vmem:[#allocation1] sm:$0xff pattern:$0x73625140]
    %v286 = vld.sshfl [vmem:[#allocation1 + $0x8] sm:$0xff pattern:$0x73625140]
    %v289 = vsub.f32 %v281, %v285
    %v290 = vsub.f32 %v282, %v286
    %v291 = vmul.f32 %v289, %v289
    %v292 = vmul.f32 %v290, %v290
    %v295 = vrot.slane %v292, 6
    %v296 = vsel %vm270, %v291, %v295
    %298 = vst [vmem:[#allocation10 + $0x4] sm:$0xf] %v296
    %v299 = vld [vmem:[#allocation8 + $0x8] sm:$0xf]
    %v300 = vld [vmem:[#allocation2] sm:$0x3]
    %302 = vset.pattern.permute.xlu0 4
    %303 = vperm.xlu0 %302, %v300
    %v304 = vpop.permute.xlu0 %303
    %v306 = vadd.f32 %v242, %v304
    %v307 = vadd.f32 %v243, %v304
    %309 = vst [vmem:[#allocation1] ss:$4 sm:$0xff] %v299
    %v310 = vld.sshfl [vmem:[#allocation1] sm:$0xff pattern:$0x73625140]
    %v311 = vld.sshfl [vmem:[#allocation1 + $0x8] sm:$0xff pattern:$0x73625140]
    %v314 = vsub.f32 %v306, %v310
    %v315 = vsub.f32 %v307, %v311
    %v316 = vmul.f32 %v314, %v314
    %v317 = vmul.f32 %v315, %v315
    %v320 = vrot.slane %v317, 6
    %v321 = vsel %vm270, %v316, %v320
    %323 = vst [vmem:[#allocation10 + $0x8] sm:$0xf] %v321
    %v324 = vld [vmem:[#allocation8 + $0xc] sm:$0xf]
    %v325 = vld [vmem:[#allocation2] sm:$0x3]
    %327 = vset.pattern.permute.xlu0 5
    %328 = vperm.xlu0 %327, %v325
    %v329 = vpop.permute.xlu0 %328
    %v331 = vadd.f32 %v248, %v329
    %v332 = vadd.f32 %v249, %v329
    %334 = vst [vmem:[#allocation1] ss:$4 sm:$0xff] %v324
    %v335 = vld.sshfl [vmem:[#allocation1] sm:$0xff pattern:$0x73625140]
    %v336 = vld.sshfl [vmem:[#allocation1 + $0x8] sm:$0xff pattern:$0x73625140]
    %v339 = vsub.f32 %v331, %v335
    %v340 = vsub.f32 %v332, %v336
    %v341 = vmul.f32 %v339, %v339
    %v342 = vmul.f32 %v340, %v340
    %v345 = vrot.slane %v342, 6
    %v346 = vsel %vm270, %v341, %v345
    %348 = vst [vmem:[#allocation10 + $0xc] sm:$0xf] %v346
    // Predicated region
    $region34: #{tpu_custom_call.1} parent=1 // pred_check
      _
    $region35: #{tpu_custom_call.1} parent=1 // pred_check_branch
      %350 = sbr.rel (0) target = $region37
    $region36: #{tpu_custom_call.1} parent=1 // pred_region
      %352 = vsyncadd [#allocation4], 0
      %s354 = sshll.u32 [#allocation10], 4
      %s355 = int_to_ptr.vmem [resolvable:$true] %s354
      %s356 = sshll.u32 %s4, 4
      %s357 = int_to_ptr.hbm [resolvable:$true] %s356
      %359 = dma.vmem_to_hbm [thread:$0]  %s355, 256, %s357, [#allocation4]
    $region37: #{tpu_custom_call.1} parent=1 // pred_fallthru
      _
    // Predicated region
    $region38: #{tpu_custom_call.1} parent=1 // pred_check
      _
    $region39: #{tpu_custom_call.1} parent=1 // pred_check_branch
      %361 = sbr.rel (0) target = $region41
    $region40: #{tpu_custom_call.1} parent=1 // pred_region
      %363 = dma.done [#allocation4], 256
    $region41: #{tpu_custom_call.1} parent=1 // pred_fallthru
      _
    %364 = vsyncpa [#allocation3], 1
    %365 = vsyncpa [#allocation7], 1
    %366 = vsyncpa [#allocation4], 1
    %367 = vsyncpa [#allocation5], 1

</llo_original>
